<compile_context>
chip_gen: v6e
topology: v6e:2x2x1
jax: 0.10.0
libtpu: 0.0.40
codegen_flags: <defaults>
</compile_context>

<pallas_src>
import functools

import jax
import jax.numpy as jnp
from jax import lax
from jax.experimental import pallas as pl
from jax.experimental.pallas import tpu as pltpu


def critic_kernel(state_ref, action_ref,
                  w1_ref, w2_ref, wa_ref, w3_ref,
                  vec_ref, out_ref):
    eps = 1e-5  # PyTorch nn.LayerNorm default
    F1 = w1_ref.shape[1]
    F2 = w2_ref.shape[1]
    F3 = w3_ref.shape[1]

    def layernorm(x, g, b):
        mu = jnp.mean(x, axis=-1, keepdims=True)
        xc = x - mu
        var = jnp.mean(xc * xc, axis=-1, keepdims=True)
        return xc * lax.rsqrt(var + eps) * g + b

    # Packed small-vector rows (static slices; one resident VMEM block).
    b1  = vec_ref[0:1,   0:F1]
    g1  = vec_ref[1:2,   0:F1]
    be1 = vec_ref[2:3,   0:F1]
    b2  = vec_ref[3:4,   0:F2]
    g2  = vec_ref[4:5,   0:F2]
    be2 = vec_ref[5:6,   0:F2]
    ba  = vec_ref[6:7,   0:F2]
    b3  = vec_ref[7:8,   0:F3]
    g3  = vec_ref[8:9,   0:F3]
    be3 = vec_ref[9:10,  0:F3]
    wq  = vec_ref[10:11, 0:F3]   # q head as a [1, F3] row
    bq  = vec_ref[11:12, 0:1]

    # state_value = relu(bn1(fc1(state)))
    x = jnp.dot(state_ref[...], w1_ref[...],
                preferred_element_type=jnp.float32) + b1
    x = jnp.maximum(layernorm(x, g1, be1), 0.0)

    # state_value = bn2(fc2(state_value))
    x = jnp.dot(x, w2_ref[...],
                preferred_element_type=jnp.float32) + b2
    x = layernorm(x, g2, be2)

    # action_value = action_value(action)
    av = jnp.dot(action_ref[...], wa_ref[...],
                 preferred_element_type=jnp.float32) + ba

    # state_action_value = relu(state_value + action_value)
    sav = jnp.maximum(x + av, 0.0)

    # sav = relu(bn3(fc3(sav)))
    sav = jnp.dot(sav, w3_ref[...],
                  preferred_element_type=jnp.float32) + b3
    sav = jnp.maximum(layernorm(sav, g3, be3), 0.0)

    # q head, lane-dense: [1,F3] @ [tb,F3]^T -> [1, tb] row (full-width
    # stores instead of tb/8 masked single-lane stores of a [tb,1] column).
    q_row = lax.dot_general(wq, sav, (((1,), (1,)), ((), ())),
                            preferred_element_type=jnp.float32) + bq
    out_ref[...] = q_row[None]          # out block is [1, 1, tb]


def _pack_vectors(params, F1, F2, F3):
    """Pack all [1, dim] vectors + q head into one [12, Dmax] f32 array."""
    dmax = max(F1, F2, F3)

    def row(v, d):
        v = jnp.asarray(v, jnp.float32).reshape(1, -1)
        return jnp.pad(v, ((0, 0), (0, dmax - d)))

    return jnp.concatenate([
        row(params["b1"], F1), row(params["g1"], F1), row(params["be1"], F1),
        row(params["b2"], F2), row(params["g2"], F2), row(params["be2"], F2),
        row(params["ba"], F2),
        row(params["b3"], F3), row(params["g3"], F3), row(params["be3"], F3),
        row(params["wq"].reshape(1, F3), F3),          # [F3,1] -> [1,F3]
        row(params["bq"].reshape(1, 1), 1),
    ], axis=0)


def _round_up(x, m):
    return ((x + m - 1) // m) * m


def _choose_tb(B, block_b):
    """Fixed batch tile: multiple of 8, capped by the batch, >=2 tiles when
    the batch can be split (keeps both v7x TensorCores busy)."""
    tb = min(_round_up(block_b, 8), _round_up(B, 8))
    if B > 8 and pl.cdiv(B, tb) < 2:
        tb = max(8, _round_up(pl.cdiv(B, 2), 8))
    return tb


def _vmem_limit_bytes(tb, input_dims, n_actions, F1, F2, F3, dmax):
    f32 = 4
    # double-buffered batch tiles (state, action, q-row out)
    io = 2 * tb * (input_dims + n_actions + 1) * f32
    # resident weights + packed vectors (assume the compiler double-buffers)
    w = 2 * (input_dims * F1 + F1 * F2 + n_actions * F2 + F2 * F3
             + 12 * dmax) * f32
    # live per-step intermediates (rough upper bound)
    act = tb * (F1 + 3 * F2 + 2 * F3) * f32
    need = io + w + act
    # 2x headroom + 1 MiB scratch, clamped to [32 MiB, 64 MiB] (v7x physical).
    return int(min(64 * 2**20, max(32 * 2**20, 2 * need + (1 << 20))))


@functools.partial(jax.jit, static_argnames=("block_b",))
def critic_forward(state, action, params, *, block_b=1024):
    B, input_dims = state.shape
    n_actions = action.shape[1]
    F1 = params["w1"].shape[1]
    F2 = params["w2"].shape[1]
    F3 = params["w3"].shape[1]

    vec = _pack_vectors(params, F1, F2, F3)
    dmax = vec.shape[1]

    tb = _choose_tb(B, block_b)
    num_tiles = pl.cdiv(B, tb)

    batch_spec = lambda d: pl.BlockSpec((tb, d), lambda i: (i, 0))
    resident = lambda shape: pl.BlockSpec(shape, lambda i: (0, 0))

    q_rows = pl.pallas_call(
        critic_kernel,
        out_shape=jax.ShapeDtypeStruct((num_tiles, 1, tb), jnp.float32),
        grid=(num_tiles,),
        in_specs=[
            batch_spec(input_dims),            # state   [tb, in]
            batch_spec(n_actions),             # action  [tb, na]
            resident(params["w1"].shape),      # w1 [in, F1]
            resident(params["w2"].shape),      # w2 [F1, F2]
            resident(params["wa"].shape),      # wa [na, F2]
            resident(params["w3"].shape),      # w3 [F2, F3]
            resident(vec.shape),               # packed vectors [12, Dmax]
        ],
        out_specs=pl.BlockSpec((1, 1, tb), lambda i: (i, 0, 0)),
        compiler_params=pltpu.CompilerParams(
            dimension_semantics=("parallel",),
            vmem_limit_bytes=_vmem_limit_bytes(
                tb, input_dims, n_actions, F1, F2, F3, dmax)),
    )(state, action,
      params["w1"], params["w2"], params["wa"], params["w3"], vec)

    # [num_tiles, 1, tb] row-major == batch order; drop ragged-tail garbage.
    return q_rows.reshape(-1)[:B].reshape(B, 1)


def init_params(key, input_dims, fc1_dims, fc2_dims, fc3_dims, n_actions):
    # Mirrors the PyTorch __init__: uniform(-f, f) with f = 1/sqrt(out_features)
    # (weight.data.size()[0] is out_features for nn.Linear), f4 = 0.003 for q.
    ks = jax.random.split(key, 10)

    def lin(kw, kb, fan_in, fan_out, bound):
        w = jax.random.uniform(kw, (fan_in, fan_out), jnp.float32, -bound, bound)
        b = jax.random.uniform(kb, (1, fan_out), jnp.float32, -bound, bound)
        return w, b

    f1 = 1.0 / jnp.sqrt(fc1_dims)
    f2 = 1.0 / jnp.sqrt(fc2_dims)
    f3 = 1.0 / jnp.sqrt(fc3_dims)
    f4 = 0.003
    f5 = 1.0 / jnp.sqrt(fc2_dims)

    w1, b1 = lin(ks[0], ks[1], input_dims, fc1_dims, f1)
    w2, b2 = lin(ks[2], ks[3], fc1_dims, fc2_dims, f2)
    w3, b3 = lin(ks[4], ks[5], fc2_dims, fc3_dims, f3)
    wq, bq = lin(ks[6], ks[7], fc3_dims, 1, f4)
    wa, ba = lin(ks[8], ks[9], n_actions, fc2_dims, f5)

    return {
        "w1": w1, "b1": b1,
        "g1": jnp.ones((1, fc1_dims), jnp.float32),
        "be1": jnp.zeros((1, fc1_dims), jnp.float32),
        "w2": w2, "b2": b2,
        "g2": jnp.ones((1, fc2_dims), jnp.float32),
        "be2": jnp.zeros((1, fc2_dims), jnp.float32),
        "wa": wa, "ba": ba,
        "w3": w3, "b3": b3,
        "g3": jnp.ones((1, fc3_dims), jnp.float32),
        "be3": jnp.zeros((1, fc3_dims), jnp.float32),
        "wq": wq, "bq": bq,
    }


def reference_forward(state, action, p):
    eps = 1e-5

    def ln(x, g, b):
        mu = jnp.mean(x, axis=-1, keepdims=True)
        var = jnp.mean((x - mu) ** 2, axis=-1, keepdims=True)
        return (x - mu) / jnp.sqrt(var + eps) * g + b

    x = state @ p["w1"] + p["b1"]
    x = jax.nn.relu(ln(x, p["g1"], p["be1"]))
    x = x @ p["w2"] + p["b2"]
    x = ln(x, p["g2"], p["be2"])
    av = action @ p["wa"] + p["ba"]
    sav = jax.nn.relu(x + av)
    sav = sav @ p["w3"] + p["b3"]
    sav = jax.nn.relu(ln(sav, p["g3"], p["be3"]))
    return sav @ p["wq"] + p["bq"]


if __name__ == "__main__":
    input_dims, fc1_dims, fc2_dims, fc3_dims, n_actions = 16, 32, 64, 32, 8

    key = jax.random.PRNGKey(0)
    kp, ks1, ka1, ks2, ka2 = jax.random.split(key, 5)
    params = init_params(kp, input_dims, fc1_dims, fc2_dims, fc3_dims, n_actions)

    # Case 1: small batch, single tile.
    B1 = 8
    state1 = jax.random.normal(ks1, (B1, input_dims), jnp.float32)
    action1 = jax.random.normal(ka1, (B1, n_actions), jnp.float32)
    q1 = critic_forward(state1, action1, params)
    jax.block_until_ready(q1)
    assert q1.shape == (B1, 1)
    assert jnp.allclose(q1, reference_forward(state1, action1, params),
                        atol=1e-4, rtol=1e-4), "mismatch (single tile)"

    # Case 2: multi-tile grid with a ragged last tile (exercises the cdiv
    # grid, megacore-splittable batch axis, and the lane-dense q-row store).
    B2 = 200
    state2 = jax.random.normal(ks2, (B2, input_dims), jnp.float32)
    action2 = jax.random.normal(ka2, (B2, n_actions), jnp.float32)
    q2 = critic_forward(state2, action2, params, block_b=64)
    jax.block_until_ready(q2)
    assert q2.shape == (B2, 1)
    assert jnp.allclose(q2, reference_forward(state2, action2, params),
                        atol=1e-4, rtol=1e-4), "mismatch (ragged multi-tile)"

    print("KERNEL_OK")
</pallas_src>

<mosaic_0001>
module attributes {stable_mosaic.version = 11 : i64} {
  func.func @critic_kernel(%arg0: i32, %arg1: memref<8x16xf32, #tpu.memory_space<vmem>>, %arg2: memref<8x8xf32, #tpu.memory_space<vmem>>, %arg3: memref<16x32xf32, #tpu.memory_space<vmem>>, %arg4: memref<32x64xf32, #tpu.memory_space<vmem>>, %arg5: memref<8x64xf32, #tpu.memory_space<vmem>>, %arg6: memref<64x32xf32, #tpu.memory_space<vmem>>, %arg7: memref<12x64xf32, #tpu.memory_space<vmem>>, %arg8: memref<1x1x8xf32, #tpu.memory_space<vmem>>) attributes {dimension_semantics = [#tpu.dimension_semantics<parallel>], iteration_bounds = array<i64: 1>, scalar_prefetch = 0 : i64, scratch_operands = 0 : i64, tpu.core_type = #tpu.core_type<tc>, window_params = [{transform_indices = @transform_0, window_bounds = array<i64: 8, 16>}, {transform_indices = @transform_1, window_bounds = array<i64: 8, 8>}, {pipeline_mode = #tpu.pipeline_mode<synchronous>, transform_indices = @transform_2, window_bounds = array<i64: 16, 32>}, {pipeline_mode = #tpu.pipeline_mode<synchronous>, transform_indices = @transform_3, window_bounds = array<i64: 32, 64>}, {pipeline_mode = #tpu.pipeline_mode<synchronous>, transform_indices = @transform_4, window_bounds = array<i64: 8, 64>}, {pipeline_mode = #tpu.pipeline_mode<synchronous>, transform_indices = @transform_5, window_bounds = array<i64: 64, 32>}, {pipeline_mode = #tpu.pipeline_mode<synchronous>, transform_indices = @transform_6, window_bounds = array<i64: 12, 64>}, {transform_indices = @transform_7, window_bounds = array<i64: 1, 1, 8>}]} {
    %c0 = arith.constant 0 : index
    %c0_0 = arith.constant 0 : index
    %0 = vector.load %arg7[%c0, %c0_0] : memref<12x64xf32, #tpu.memory_space<vmem>>, vector<1x32xf32>
    %c1 = arith.constant 1 : index
    %c0_1 = arith.constant 0 : index
    %1 = vector.load %arg7[%c1, %c0_1] : memref<12x64xf32, #tpu.memory_space<vmem>>, vector<1x32xf32>
    %c2 = arith.constant 2 : index
    %c0_2 = arith.constant 0 : index
    %2 = vector.load %arg7[%c2, %c0_2] : memref<12x64xf32, #tpu.memory_space<vmem>>, vector<1x32xf32>
    %c3 = arith.constant 3 : index
    %c0_3 = arith.constant 0 : index
    %3 = vector.load %arg7[%c3, %c0_3] : memref<12x64xf32, #tpu.memory_space<vmem>>, vector<1x64xf32>
    %c4 = arith.constant 4 : index
    %c0_4 = arith.constant 0 : index
    %4 = vector.load %arg7[%c4, %c0_4] : memref<12x64xf32, #tpu.memory_space<vmem>>, vector<1x64xf32>
    %c5 = arith.constant 5 : index
    %c0_5 = arith.constant 0 : index
    %5 = vector.load %arg7[%c5, %c0_5] : memref<12x64xf32, #tpu.memory_space<vmem>>, vector<1x64xf32>
    %c6 = arith.constant 6 : index
    %c0_6 = arith.constant 0 : index
    %6 = vector.load %arg7[%c6, %c0_6] : memref<12x64xf32, #tpu.memory_space<vmem>>, vector<1x64xf32>
    %c7 = arith.constant 7 : index
    %c0_7 = arith.constant 0 : index
    %7 = vector.load %arg7[%c7, %c0_7] : memref<12x64xf32, #tpu.memory_space<vmem>>, vector<1x32xf32>
    %c8 = arith.constant 8 : index
    %c0_8 = arith.constant 0 : index
    %8 = vector.load %arg7[%c8, %c0_8] : memref<12x64xf32, #tpu.memory_space<vmem>>, vector<1x32xf32>
    %c9 = arith.constant 9 : index
    %c0_9 = arith.constant 0 : index
    %9 = vector.load %arg7[%c9, %c0_9] : memref<12x64xf32, #tpu.memory_space<vmem>>, vector<1x32xf32>
    %c10 = arith.constant 10 : index
    %c0_10 = arith.constant 0 : index
    %10 = vector.load %arg7[%c10, %c0_10] : memref<12x64xf32, #tpu.memory_space<vmem>>, vector<1x32xf32>
    %c11 = arith.constant 11 : index
    %c0_11 = arith.constant 0 : index
    %11 = vector.load %arg7[%c11, %c0_11] : memref<12x64xf32, #tpu.memory_space<vmem>>, vector<1x1xf32>
    %c0_12 = arith.constant 0 : index
    %c0_13 = arith.constant 0 : index
    %12 = vector.load %arg1[%c0_12, %c0_13] : memref<8x16xf32, #tpu.memory_space<vmem>>, vector<8x16xf32>
    %c0_14 = arith.constant 0 : index
    %c0_15 = arith.constant 0 : index
    %13 = vector.load %arg3[%c0_14, %c0_15] : memref<16x32xf32, #tpu.memory_space<vmem>>, vector<16x32xf32>
    %cst = arith.constant dense<0.000000e+00> : vector<8x32xf32>
    %14 = tpu.matmul %12, %13, %cst {dimension_numbers = #tpu.dot_dimension_numbers<[1], [0], [0], [1], [0, 0, 1, 1], [], []>} : vector<8x16xf32>, vector<16x32xf32>, vector<8x32xf32> -> vector<8x32xf32>
    %15 = vector.broadcast %0 : vector<1x32xf32> to vector<8x32xf32>
    %16 = arith.addf %14, %15 : vector<8x32xf32>
    %cst_16 = arith.constant dense<0.000000e+00> : vector<8xf32>
    %17 = vector.multi_reduction <add>, %16, %cst_16 [1] : vector<8x32xf32> to vector<8xf32>
    %18 = vector.shape_cast %17 : vector<8xf32> to vector<8x1xf32>
    %cst_17 = arith.constant 3.200000e+01 : f32
    %19 = vector.broadcast %cst_17 : f32 to vector<8x1xf32>
    %20 = arith.divf %18, %19 : vector<8x1xf32>
    %21 = vector.broadcast %20 : vector<8x1xf32> to vector<8x32xf32>
    %22 = arith.subf %16, %21 : vector<8x32xf32>
    %23 = arith.mulf %22, %22 : vector<8x32xf32>
    %cst_18 = arith.constant dense<0.000000e+00> : vector<8xf32>
    %24 = vector.multi_reduction <add>, %23, %cst_18 [1] : vector<8x32xf32> to vector<8xf32>
    %25 = vector.shape_cast %24 : vector<8xf32> to vector<8x1xf32>
    %cst_19 = arith.constant 3.200000e+01 : f32
    %26 = vector.broadcast %cst_19 : f32 to vector<8x1xf32>
    %27 = arith.divf %25, %26 : vector<8x1xf32>
    %cst_20 = arith.constant 9.99999974E-6 : f32
    %28 = vector.broadcast %cst_20 : f32 to vector<8x1xf32>
    %29 = arith.addf %27, %28 : vector<8x1xf32>
    %30 = math.rsqrt %29 : vector<8x1xf32>
    %31 = vector.broadcast %30 : vector<8x1xf32> to vector<8x32xf32>
    %32 = arith.mulf %22, %31 : vector<8x32xf32>
    %33 = vector.broadcast %1 : vector<1x32xf32> to vector<8x32xf32>
    %34 = arith.mulf %32, %33 : vector<8x32xf32>
    %35 = vector.broadcast %2 : vector<1x32xf32> to vector<8x32xf32>
    %36 = arith.addf %34, %35 : vector<8x32xf32>
    %cst_21 = arith.constant 0.000000e+00 : f32
    %37 = vector.broadcast %cst_21 : f32 to vector<8x32xf32>
    %38 = arith.maximumf %36, %37 : vector<8x32xf32>
    %c0_22 = arith.constant 0 : index
    %c0_23 = arith.constant 0 : index
    %39 = vector.load %arg4[%c0_22, %c0_23] : memref<32x64xf32, #tpu.memory_space<vmem>>, vector<32x64xf32>
    %cst_24 = arith.constant dense<0.000000e+00> : vector<8x64xf32>
    %40 = tpu.matmul %38, %39, %cst_24 {dimension_numbers = #tpu.dot_dimension_numbers<[1], [0], [0], [1], [0, 0, 1, 1], [], []>} : vector<8x32xf32>, vector<32x64xf32>, vector<8x64xf32> -> vector<8x64xf32>
    %41 = vector.broadcast %3 : vector<1x64xf32> to vector<8x64xf32>
    %42 = arith.addf %40, %41 : vector<8x64xf32>
    %cst_25 = arith.constant dense<0.000000e+00> : vector<8xf32>
    %43 = vector.multi_reduction <add>, %42, %cst_25 [1] : vector<8x64xf32> to vector<8xf32>
    %44 = vector.shape_cast %43 : vector<8xf32> to vector<8x1xf32>
    %cst_26 = arith.constant 6.400000e+01 : f32
    %45 = vector.broadcast %cst_26 : f32 to vector<8x1xf32>
    %46 = arith.divf %44, %45 : vector<8x1xf32>
    %47 = vector.broadcast %46 : vector<8x1xf32> to vector<8x64xf32>
    %48 = arith.subf %42, %47 : vector<8x64xf32>
    %49 = arith.mulf %48, %48 : vector<8x64xf32>
    %cst_27 = arith.constant dense<0.000000e+00> : vector<8xf32>
    %50 = vector.multi_reduction <add>, %49, %cst_27 [1] : vector<8x64xf32> to vector<8xf32>
    %51 = vector.shape_cast %50 : vector<8xf32> to vector<8x1xf32>
    %cst_28 = arith.constant 6.400000e+01 : f32
    %52 = vector.broadcast %cst_28 : f32 to vector<8x1xf32>
    %53 = arith.divf %51, %52 : vector<8x1xf32>
    %cst_29 = arith.constant 9.99999974E-6 : f32
    %54 = vector.broadcast %cst_29 : f32 to vector<8x1xf32>
    %55 = arith.addf %53, %54 : vector<8x1xf32>
    %56 = math.rsqrt %55 : vector<8x1xf32>
    %57 = vector.broadcast %56 : vector<8x1xf32> to vector<8x64xf32>
    %58 = arith.mulf %48, %57 : vector<8x64xf32>
    %59 = vector.broadcast %4 : vector<1x64xf32> to vector<8x64xf32>
    %60 = arith.mulf %58, %59 : vector<8x64xf32>
    %61 = vector.broadcast %5 : vector<1x64xf32> to vector<8x64xf32>
    %62 = arith.addf %60, %61 : vector<8x64xf32>
    %c0_30 = arith.constant 0 : index
    %c0_31 = arith.constant 0 : index
    %63 = vector.load %arg2[%c0_30, %c0_31] : memref<8x8xf32, #tpu.memory_space<vmem>>, vector<8x8xf32>
    %c0_32 = arith.constant 0 : index
    %c0_33 = arith.constant 0 : index
    %64 = vector.load %arg5[%c0_32, %c0_33] : memref<8x64xf32, #tpu.memory_space<vmem>>, vector<8x64xf32>
    %cst_34 = arith.constant dense<0.000000e+00> : vector<8x64xf32>
    %65 = tpu.matmul %63, %64, %cst_34 {dimension_numbers = #tpu.dot_dimension_numbers<[1], [0], [0], [1], [0, 0, 1, 1], [], []>} : vector<8x8xf32>, vector<8x64xf32>, vector<8x64xf32> -> vector<8x64xf32>
    %66 = vector.broadcast %6 : vector<1x64xf32> to vector<8x64xf32>
    %67 = arith.addf %65, %66 : vector<8x64xf32>
    %68 = arith.addf %62, %67 : vector<8x64xf32>
    %cst_35 = arith.constant 0.000000e+00 : f32
    %69 = vector.broadcast %cst_35 : f32 to vector<8x64xf32>
    %70 = arith.maximumf %68, %69 : vector<8x64xf32>
    %c0_36 = arith.constant 0 : index
    %c0_37 = arith.constant 0 : index
    %71 = vector.load %arg6[%c0_36, %c0_37] : memref<64x32xf32, #tpu.memory_space<vmem>>, vector<64x32xf32>
    %cst_38 = arith.constant dense<0.000000e+00> : vector<8x32xf32>
    %72 = tpu.matmul %70, %71, %cst_38 {dimension_numbers = #tpu.dot_dimension_numbers<[1], [0], [0], [1], [0, 0, 1, 1], [], []>} : vector<8x64xf32>, vector<64x32xf32>, vector<8x32xf32> -> vector<8x32xf32>
    %73 = vector.broadcast %7 : vector<1x32xf32> to vector<8x32xf32>
    %74 = arith.addf %72, %73 : vector<8x32xf32>
    %cst_39 = arith.constant dense<0.000000e+00> : vector<8xf32>
    %75 = vector.multi_reduction <add>, %74, %cst_39 [1] : vector<8x32xf32> to vector<8xf32>
    %76 = vector.shape_cast %75 : vector<8xf32> to vector<8x1xf32>
    %cst_40 = arith.constant 3.200000e+01 : f32
    %77 = vector.broadcast %cst_40 : f32 to vector<8x1xf32>
    %78 = arith.divf %76, %77 : vector<8x1xf32>
    %79 = vector.broadcast %78 : vector<8x1xf32> to vector<8x32xf32>
    %80 = arith.subf %74, %79 : vector<8x32xf32>
    %81 = arith.mulf %80, %80 : vector<8x32xf32>
    %cst_41 = arith.constant dense<0.000000e+00> : vector<8xf32>
    %82 = vector.multi_reduction <add>, %81, %cst_41 [1] : vector<8x32xf32> to vector<8xf32>
    %83 = vector.shape_cast %82 : vector<8xf32> to vector<8x1xf32>
    %cst_42 = arith.constant 3.200000e+01 : f32
    %84 = vector.broadcast %cst_42 : f32 to vector<8x1xf32>
    %85 = arith.divf %83, %84 : vector<8x1xf32>
    %cst_43 = arith.constant 9.99999974E-6 : f32
    %86 = vector.broadcast %cst_43 : f32 to vector<8x1xf32>
    %87 = arith.addf %85, %86 : vector<8x1xf32>
    %88 = math.rsqrt %87 : vector<8x1xf32>
    %89 = vector.broadcast %88 : vector<8x1xf32> to vector<8x32xf32>
    %90 = arith.mulf %80, %89 : vector<8x32xf32>
    %91 = vector.broadcast %8 : vector<1x32xf32> to vector<8x32xf32>
    %92 = arith.mulf %90, %91 : vector<8x32xf32>
    %93 = vector.broadcast %9 : vector<1x32xf32> to vector<8x32xf32>
    %94 = arith.addf %92, %93 : vector<8x32xf32>
    %cst_44 = arith.constant 0.000000e+00 : f32
    %95 = vector.broadcast %cst_44 : f32 to vector<8x32xf32>
    %96 = arith.maximumf %94, %95 : vector<8x32xf32>
    %cst_45 = arith.constant dense<0.000000e+00> : vector<1x8xf32>
    %97 = tpu.matmul %10, %96, %cst_45 {dimension_numbers = #tpu.dot_dimension_numbers<[1], [1], [0], [0], [0, 0, 1, 0], [], []>} : vector<1x32xf32>, vector<8x32xf32>, vector<1x8xf32> -> vector<1x8xf32>
    %98 = vector.broadcast %11 : vector<1x1xf32> to vector<1x8xf32>
    %99 = arith.addf %97, %98 : vector<1x8xf32>
    %100 = vector.shape_cast %99 : vector<1x8xf32> to vector<1x1x8xf32>
    %c0_46 = arith.constant 0 : index
    %c0_47 = arith.constant 0 : index
    %c0_48 = arith.constant 0 : index
    %101 = vector.load %arg8[%c0_46, %c0_47, %c0_48] : memref<1x1x8xf32, #tpu.memory_space<vmem>>, vector<1x1x8xf32>
    tpu.vector_store %arg8[%c0_46, %c0_47, %c0_48], %100 {strides = array<i32>} : memref<1x1x8xf32, #tpu.memory_space<vmem>>, vector<1x1x8xf32>,
    return
  }
  func.func @transform_0(%arg0: i32) -> (i32, i32) {
    %c0_i32 = arith.constant 0 : i32
    %c0_i32_0 = arith.constant 0 : i32
    return %arg0, %c0_i32 : i32, i32
  }
  func.func @transform_1(%arg0: i32) -> (i32, i32) {
    %c0_i32 = arith.constant 0 : i32
    %c0_i32_0 = arith.constant 0 : i32
    return %arg0, %c0_i32 : i32, i32
  }
  func.func @transform_2(%arg0: i32) -> (i32, i32) {
    %c0_i32 = arith.constant 0 : i32
    %c0_i32_0 = arith.constant 0 : i32
    %c0_i32_1 = arith.constant 0 : i32
    return %c0_i32, %c0_i32_0 : i32, i32
  }
  func.func @transform_3(%arg0: i32) -> (i32, i32) {
    %c0_i32 = arith.constant 0 : i32
    %c0_i32_0 = arith.constant 0 : i32
    %c0_i32_1 = arith.constant 0 : i32
    return %c0_i32, %c0_i32_0 : i32, i32
  }
  func.func @transform_4(%arg0: i32) -> (i32, i32) {
    %c0_i32 = arith.constant 0 : i32
    %c0_i32_0 = arith.constant 0 : i32
    %c0_i32_1 = arith.constant 0 : i32
    return %c0_i32, %c0_i32_0 : i32, i32
  }
  func.func @transform_5(%arg0: i32) -> (i32, i32) {
    %c0_i32 = arith.constant 0 : i32
    %c0_i32_0 = arith.constant 0 : i32
    %c0_i32_1 = arith.constant 0 : i32
    return %c0_i32, %c0_i32_0 : i32, i32
  }
  func.func @transform_6(%arg0: i32) -> (i32, i32) {
    %c0_i32 = arith.constant 0 : i32
    %c0_i32_0 = arith.constant 0 : i32
    %c0_i32_1 = arith.constant 0 : i32
    return %c0_i32, %c0_i32_0 : i32, i32
  }
  func.func @transform_7(%arg0: i32) -> (i32, i32, i32) {
    %c0_i32 = arith.constant 0 : i32
    %c0_i32_0 = arith.constant 0 : i32
    %c0_i32_1 = arith.constant 0 : i32
    return %arg0, %c0_i32, %c0_i32_0 : i32, i32, i32
  }
}

</mosaic_0001>

<llo_original>
// kernel: critic_forward.1
$region0: #{critic_forward.1}
  #allocation0 [shape = 'u32[]', space=smem, size = 0x4, offset = 0x4, fixed_abs, tag = 'smem constant byte address 0x4 - core index']
  #allocation1 [shape = 'u32[144,128]{1,0:T(1,128)}', space=vmem, size = 0x12000, scoped, tag = 'internal scratch']
  %s0 = inlined_call_operand.vmem [shape: f32[8,16], index: 0, kind: input, shape index: {}]
  %s1 = inlined_call_operand.vmem [shape: f32[8,8], index: 1, kind: input, shape index: {}]
  %s2 = inlined_call_operand.vmem [shape: f32[16,32], index: 2, kind: input, shape index: {}]
  %s3 = inlined_call_operand.vmem [shape: f32[32,64], index: 3, kind: input, shape index: {}]
  %s4 = inlined_call_operand.vmem [shape: f32[8,64], index: 4, kind: input, shape index: {}]
  %s5 = inlined_call_operand.vmem [shape: f32[64,32], index: 5, kind: input, shape index: {}]
  %s6 = inlined_call_operand.vmem [shape: f32[12,64], index: 6, kind: input, shape index: {}]
  %s7 = inlined_call_operand.hbm [shape: f32[1,1,8], index: 7, kind: output, shape index: {}]
  %s8 = sld [smem:[#allocation0]]
  $region38: #{critic_forward.1} parent=0
    _
  %s10 = ssub.s32 1, %s8
  %s11 = scalar_select 0, %s10, %s8
  $region1: #{critic_forward.1} parent=0
    #allocation2 [shape = 'u8[512]{0}', space=vmem, size = 0x400, scoped, tag = 'output window, operand 0, single buffered']
    #allocation3 [shape = 's32[1]{0}', space=sflag, size = 0x4, scoped, tag = 'scoped memory for critic_forward.1']
    %12 = vsyncpa [#allocation3], 0
    // Predicated region
    $region2: #{critic_forward.1} parent=1 // pred_check
      _
    $region3: #{critic_forward.1} parent=1 // pred_check_branch
      %14 = sbr.rel (0) target = $region5
    $region4: #{critic_forward.1} parent=1 // pred_region
      _
    $region5: #{critic_forward.1} parent=1 // pred_fallthru
      _
    // Predicated region
    $region6: #{critic_forward.1} parent=1 // pred_check
      _
    $region7: #{critic_forward.1} parent=1 // pred_check_branch
      %16 = sbr.rel (0) target = $region9
    $region8: #{critic_forward.1} parent=1 // pred_region
      _
    $region9: #{critic_forward.1} parent=1 // pred_fallthru
      _
    // Predicated region
    $region10: #{critic_forward.1} parent=1 // pred_check
      _
    $region11: #{critic_forward.1} parent=1 // pred_check_branch
      %18 = sbr.rel (0) target = $region13
    $region12: #{critic_forward.1} parent=1 // pred_region
      _
    $region13: #{critic_forward.1} parent=1 // pred_fallthru
      _
    // Predicated region
    $region14: #{critic_forward.1} parent=1 // pred_check
      _
    $region15: #{critic_forward.1} parent=1 // pred_check_branch
      %20 = sbr.rel (0) target = $region17
    $region16: #{critic_forward.1} parent=1 // pred_region
      _
    $region17: #{critic_forward.1} parent=1 // pred_fallthru
      _
    // Predicated region
    $region18: #{critic_forward.1} parent=1 // pred_check
      _
    $region19: #{critic_forward.1} parent=1 // pred_check_branch
      %22 = sbr.rel (0) target = $region21
    $region20: #{critic_forward.1} parent=1 // pred_region
      _
    $region21: #{critic_forward.1} parent=1 // pred_fallthru
      _
    // Predicated region
    $region22: #{critic_forward.1} parent=1 // pred_check
      _
    $region23: #{critic_forward.1} parent=1 // pred_check_branch
      %24 = sbr.rel (0) target = $region25
    $region24: #{critic_forward.1} parent=1 // pred_region
      _
    $region25: #{critic_forward.1} parent=1 // pred_fallthru
      _
    // Predicated region
    $region26: #{critic_forward.1} parent=1 // pred_check
      _
    $region27: #{critic_forward.1} parent=1 // pred_check_branch
      %26 = sbr.rel (0) target = $region29
    $region28: #{critic_forward.1} parent=1 // pred_region
      _
    $region29: #{critic_forward.1} parent=1 // pred_fallthru
      _
    %v27 = vld [vmem:[%s6] sm:$0x1]
    %v28 = vld [vmem:[%s6 + $0x1] sm:$0x1]
    %v29 = vld [vmem:[%s6 + $0x2] sm:$0x1]
    %v30 = vld [vmem:[%s6 + $0x3] sm:$0x1]
    %v31 = vld [vmem:[%s6 + $0x4] sm:$0x1]
    %v32 = vld [vmem:[%s6 + $0x5] sm:$0x1]
    %v33 = vld [vmem:[%s6 + $0x6] sm:$0x1]
    %v34 = vld [vmem:[%s6 + $0x7] sm:$0x1]
    %v35 = vld [vmem:[%s6 + $0x8] sm:$0x1]
    %v36 = vld [vmem:[%s6 + $0x9] sm:$0x1]
    %v37 = vld [vmem:[%s6 + $0xa] sm:$0x1]
    %v38 = vld [vmem:[%s6 + $0xb] sm:$0x1]
    %v39 = vld [vmem:[%s0] sm:$0xff]
    %v40 = vld [vmem:[%s2] sm:$0xff]
    %v41 = vld [vmem:[%s2 + $0x8] sm:$0xff]
    %v42 = vlaneseq
    %v43 = vshrl.u32 %v42, 7
    %v44 = vsub.s32 0, %v43
    %v45 = vrot.slane %v27, %v44
    %vm46 = vcmask 130048
    %v48 = vsel %vm46, %v39, 0
    %50 = vmatprep.subr.mxu0 0.0
    %51 = vmatpush1.msra.mxu0 0.0
    %52 = vmatprep.subr.mxu0 0.0
    %53 = vmatpush1.msra.mxu0 0.0
    %54 = vmatprep.subr.mxu0 0.0
    %55 = vmatpush1.msra.mxu0 0.0
    %56 = vmatprep.subr.mxu0 0.0
    %57 = vmatpush1.msra.mxu0 0.0
    %58 = vmatprep.subr.mxu0 0.0
    %59 = vmatpush1.msra.mxu0 0.0
    %60 = vmatprep.subr.mxu0 0.0
    %61 = vmatpush1.msra.mxu0 0.0
    %62 = vmatprep.subr.mxu0 0.0
    %63 = vmatpush1.msra.mxu0 0.0
    %64 = vmatprep.subr.mxu0 0.0
    %65 = vmatpush1.msra.mxu0 0.0
    %66 = vmatprep.subr.mxu0 0.0
    %67 = vmatpush1.msra.mxu0 0.0
    %68 = vmatprep.subr.mxu0 0.0
    %69 = vmatpush1.msra.mxu0 0.0
    %70 = vmatprep.subr.mxu0 0.0
    %71 = vmatpush1.msra.mxu0 0.0
    %72 = vmatprep.subr.mxu0 0.0
    %73 = vmatpush1.msra.mxu0 0.0
    %74 = vmatprep.subr.mxu0 0.0
    %75 = vmatpush1.msra.mxu0 0.0
    %76 = vmatprep.subr.mxu0 0.0
    %77 = vmatpush1.msra.mxu0 0.0
    %78 = vmatprep.subr.mxu0 0.0
    %79 = vmatpush1.msra.mxu0 %v41
    %80 = vmatprep.subr.mxu0 0.0
    %81 = vmatpush1.msra.mxu0 %v40
    %82 = vmatprep.subr.mxu0 0.0
    %83 = vmatpush2.msra.mxu0 0.0
    %84 = vmatprep.subr.mxu0 0.0
    %85 = vmatpush2.msra.mxu0 0.0
    %86 = vmatprep.subr.mxu0 0.0
    %87 = vmatpush2.msra.mxu0 0.0
    %88 = vmatprep.subr.mxu0 0.0
    %89 = vmatpush2.msra.mxu0 0.0
    %90 = vmatprep.subr.mxu0 0.0
    %91 = vmatpush2.msra.mxu0 0.0
    %92 = vmatprep.subr.mxu0 0.0
    %93 = vmatpush2.msra.mxu0 0.0
    %94 = vmatprep.subr.mxu0 0.0
    %95 = vmatpush2.msra.mxu0 0.0
    %96 = vmatprep.subr.mxu0 0.0
    %97 = vmatpush2.msra.mxu0 0.0
    %98 = vmatprep.subr.mxu0 0.0
    %99 = vmatpush2.msra.mxu0 0.0
    %100 = vmatprep.subr.mxu0 0.0
    %101 = vmatpush2.msra.mxu0 0.0
    %102 = vmatprep.subr.mxu0 0.0
    %103 = vmatpush2.msra.mxu0 0.0
    %104 = vmatprep.subr.mxu0 0.0
    %105 = vmatpush2.msra.mxu0 0.0
    %106 = vmatprep.subr.mxu0 0.0
    %107 = vmatpush2.msra.mxu0 0.0
    %108 = vmatprep.subr.mxu0 0.0
    %109 = vmatpush2.msra.mxu0 0.0
    %110 = vmatprep.subr.mxu0 0.0
    %111 = vmatpush2.msra.mxu0 0.0
    %112 = vmatprep.subr.mxu0 0.0
    %113 = vmatpush2.msra.mxu0 0.0
    %114 = vmatprep.mubr.f32.mxu0 0.0
    %115 = vmatmul.mubr.f32.gmra.mxu0 %v48
    %v116 = vpop.f32.mrf.mxu0
    %v117 = vadd.f32 %v45, %v116
    %v118 = vpop.f32.mrf.mxu0
    %119 = vdwg.mxu0
    %vm120 = vcmask 261120
    %v121 = vsel %vm120, %v117, 0.0
    %122 = vadd.xlane.f32.xlu0 %v121
    %v123 = vpop.xlane.xlu0 %122
    %v124 = vrcp.pop 32.0
    %v125 = vmul.f32 %v123, %v124
    %v126 = vsub.f32 %v117, %v125
    %v127 = vmul.f32 %v126, %v126
    %v128 = vsel %vm120, %v127, 0.0
    %129 = vadd.xlane.f32.xlu0 %v128
    %v130 = vpop.xlane.xlu0 %129
    %v131 = vmul.f32 %v130, %v124
    %v132 = vadd.f32 %v131, 1e-05
    %v133 = vrsqrt.pop %v132
    %v134 = vmul.f32 %v126, %v133
    %v135 = vlaneseq
    %v136 = vshrl.u32 %v135, 7
    %v137 = vsub.s32 0, %v136
    %v138 = vrot.slane %v28, %v137
    %v139 = vmul.f32 %v134, %v138
    %v140 = vlaneseq
    %v141 = vshrl.u32 %v140, 7
    %v142 = vsub.s32 0, %v141
    %v143 = vrot.slane %v29, %v142
    %v144 = vadd.f32 %v139, %v143
    %v145 = vmax.f32 %v144, 0.0
    %v146 = vld [vmem:[%s3] sm:$0xff]
    %v147 = vld [vmem:[%s3 + $0x8] sm:$0xff]
    %v148 = vld [vmem:[%s3 + $0x10] sm:$0xff]
    %v149 = vld [vmem:[%s3 + $0x18] sm:$0xff]
    %v150 = vlaneseq
    %v151 = vshrl.u32 %v150, 7
    %v152 = vsub.s32 0, %v151
    %v153 = vrot.slane %v30, %v152
    %v155 = vsel %vm120, %v145, 0
    %157 = vmatprep.subr.mxu0 0.0
    %158 = vmatpush1.msra.mxu0 0.0
    %159 = vmatprep.subr.mxu0 0.0
    %160 = vmatpush1.msra.mxu0 0.0
    %161 = vmatprep.subr.mxu0 0.0
    %162 = vmatpush1.msra.mxu0 0.0
    %163 = vmatprep.subr.mxu0 0.0
    %164 = vmatpush1.msra.mxu0 0.0
    %165 = vmatprep.subr.mxu0 0.0
    %166 = vmatpush1.msra.mxu0 0.0
    %167 = vmatprep.subr.mxu0 0.0
    %168 = vmatpush1.msra.mxu0 0.0
    %169 = vmatprep.subr.mxu0 0.0
    %170 = vmatpush1.msra.mxu0 0.0
    %171 = vmatprep.subr.mxu0 0.0
    %172 = vmatpush1.msra.mxu0 0.0
    %173 = vmatprep.subr.mxu0 0.0
    %174 = vmatpush1.msra.mxu0 0.0
    %175 = vmatprep.subr.mxu0 0.0
    %176 = vmatpush1.msra.mxu0 0.0
    %177 = vmatprep.subr.mxu0 0.0
    %178 = vmatpush1.msra.mxu0 0.0
    %179 = vmatprep.subr.mxu0 0.0
    %180 = vmatpush1.msra.mxu0 0.0
    %181 = vmatprep.subr.mxu0 0.0
    %182 = vmatpush1.msra.mxu0 %v149
    %183 = vmatprep.subr.mxu0 0.0
    %184 = vmatpush1.msra.mxu0 %v148
    %185 = vmatprep.subr.mxu0 0.0
    %186 = vmatpush1.msra.mxu0 %v147
    %187 = vmatprep.subr.mxu0 0.0
    %188 = vmatpush1.msra.mxu0 %v146
    %189 = vmatprep.subr.mxu0 0.0
    %190 = vmatpush2.msra.mxu0 0.0
    %191 = vmatprep.subr.mxu0 0.0
    %192 = vmatpush2.msra.mxu0 0.0
    %193 = vmatprep.subr.mxu0 0.0
    %194 = vmatpush2.msra.mxu0 0.0
    %195 = vmatprep.subr.mxu0 0.0
    %196 = vmatpush2.msra.mxu0 0.0
    %197 = vmatprep.subr.mxu0 0.0
    %198 = vmatpush2.msra.mxu0 0.0
    %199 = vmatprep.subr.mxu0 0.0
    %200 = vmatpush2.msra.mxu0 0.0
    %201 = vmatprep.subr.mxu0 0.0
    %202 = vmatpush2.msra.mxu0 0.0
    %203 = vmatprep.subr.mxu0 0.0
    %204 = vmatpush2.msra.mxu0 0.0
    %205 = vmatprep.subr.mxu0 0.0
    %206 = vmatpush2.msra.mxu0 0.0
    %207 = vmatprep.subr.mxu0 0.0
    %208 = vmatpush2.msra.mxu0 0.0
    %209 = vmatprep.subr.mxu0 0.0
    %210 = vmatpush2.msra.mxu0 0.0
    %211 = vmatprep.subr.mxu0 0.0
    %212 = vmatpush2.msra.mxu0 0.0
    %213 = vmatprep.subr.mxu0 0.0
    %214 = vmatpush2.msra.mxu0 0.0
    %215 = vmatprep.subr.mxu0 0.0
    %216 = vmatpush2.msra.mxu0 0.0
    %217 = vmatprep.subr.mxu0 0.0
    %218 = vmatpush2.msra.mxu0 0.0
    %219 = vmatprep.subr.mxu0 0.0
    %220 = vmatpush2.msra.mxu0 0.0
    %221 = vmatprep.mubr.f32.mxu0 0.0
    %222 = vmatmul.mubr.f32.gmra.mxu0 %v155
    %v223 = vpop.f32.mrf.mxu0
    %v224 = vadd.f32 %v153, %v223
    %v225 = vpop.f32.mrf.mxu0
    %226 = vdwg.mxu0
    %vm227 = vcmask 523264
    %v228 = vsel %vm227, %v224, 0.0
    %229 = vadd.xlane.f32.xlu0 %v228
    %v230 = vpop.xlane.xlu0 %229
    %v231 = vrcp.pop 64.0
    %v232 = vmul.f32 %v230, %v231
    %v233 = vsub.f32 %v224, %v232
    %v234 = vmul.f32 %v233, %v233
    %v235 = vsel %vm227, %v234, 0.0
    %236 = vadd.xlane.f32.xlu0 %v235
    %v237 = vpop.xlane.xlu0 %236
    %v238 = vmul.f32 %v237, %v231
    %v239 = vadd.f32 %v238, 1e-05
    %v240 = vrsqrt.pop %v239
    %v241 = vmul.f32 %v233, %v240
    %v242 = vlaneseq
    %v243 = vshrl.u32 %v242, 7
    %v244 = vsub.s32 0, %v243
    %v245 = vrot.slane %v31, %v244
    %v246 = vmul.f32 %v241, %v245
    %v247 = vlaneseq
    %v248 = vshrl.u32 %v247, 7
    %v249 = vsub.s32 0, %v248
    %v250 = vrot.slane %v32, %v249
    %v251 = vadd.f32 %v246, %v250
    %v252 = vld [vmem:[%s1] sm:$0xff]
    %v253 = vld [vmem:[%s4] sm:$0xff]
    %v254 = vlaneseq
    %v255 = vshrl.u32 %v254, 7
    %v256 = vsub.s32 0, %v255
    %v257 = vrot.slane %v33, %v256
    %vm258 = vcmask 64512
    %v260 = vsel %vm258, %v252, 0
    %262 = vmatprep.subr.mxu0 0.0
    %263 = vmatpush1.msra.mxu0 0.0
    %264 = vmatprep.subr.mxu0 0.0
    %265 = vmatpush1.msra.mxu0 0.0
    %266 = vmatprep.subr.mxu0 0.0
    %267 = vmatpush1.msra.mxu0 0.0
    %268 = vmatprep.subr.mxu0 0.0
    %269 = vmatpush1.msra.mxu0 0.0
    %270 = vmatprep.subr.mxu0 0.0
    %271 = vmatpush1.msra.mxu0 0.0
    %272 = vmatprep.subr.mxu0 0.0
    %273 = vmatpush1.msra.mxu0 0.0
    %274 = vmatprep.subr.mxu0 0.0
    %275 = vmatpush1.msra.mxu0 0.0
    %276 = vmatprep.subr.mxu0 0.0
    %277 = vmatpush1.msra.mxu0 0.0
    %278 = vmatprep.subr.mxu0 0.0
    %279 = vmatpush1.msra.mxu0 0.0
    %280 = vmatprep.subr.mxu0 0.0
    %281 = vmatpush1.msra.mxu0 0.0
    %282 = vmatprep.subr.mxu0 0.0
    %283 = vmatpush1.msra.mxu0 0.0
    %284 = vmatprep.subr.mxu0 0.0
    %285 = vmatpush1.msra.mxu0 0.0
    %286 = vmatprep.subr.mxu0 0.0
    %287 = vmatpush1.msra.mxu0 0.0
    %288 = vmatprep.subr.mxu0 0.0
    %289 = vmatpush1.msra.mxu0 0.0
    %290 = vmatprep.subr.mxu0 0.0
    %291 = vmatpush1.msra.mxu0 0.0
    %292 = vmatprep.subr.mxu0 0.0
    %293 = vmatpush1.msra.mxu0 %v253
    %294 = vmatprep.subr.mxu0 0.0
    %295 = vmatpush2.msra.mxu0 0.0
    %296 = vmatprep.subr.mxu0 0.0
    %297 = vmatpush2.msra.mxu0 0.0
    %298 = vmatprep.subr.mxu0 0.0
    %299 = vmatpush2.msra.mxu0 0.0
    %300 = vmatprep.subr.mxu0 0.0
    %301 = vmatpush2.msra.mxu0 0.0
    %302 = vmatprep.subr.mxu0 0.0
    %303 = vmatpush2.msra.mxu0 0.0
    %304 = vmatprep.subr.mxu0 0.0
    %305 = vmatpush2.msra.mxu0 0.0
    %306 = vmatprep.subr.mxu0 0.0
    %307 = vmatpush2.msra.mxu0 0.0
    %308 = vmatprep.subr.mxu0 0.0
    %309 = vmatpush2.msra.mxu0 0.0
    %310 = vmatprep.subr.mxu0 0.0
    %311 = vmatpush2.msra.mxu0 0.0
    %312 = vmatprep.subr.mxu0 0.0
    %313 = vmatpush2.msra.mxu0 0.0
    %314 = vmatprep.subr.mxu0 0.0
    %315 = vmatpush2.msra.mxu0 0.0
    %316 = vmatprep.subr.mxu0 0.0
    %317 = vmatpush2.msra.mxu0 0.0
    %318 = vmatprep.subr.mxu0 0.0
    %319 = vmatpush2.msra.mxu0 0.0
    %320 = vmatprep.subr.mxu0 0.0
    %321 = vmatpush2.msra.mxu0 0.0
    %322 = vmatprep.subr.mxu0 0.0
    %323 = vmatpush2.msra.mxu0 0.0
    %324 = vmatprep.subr.mxu0 0.0
    %325 = vmatpush2.msra.mxu0 0.0
    %326 = vmatprep.mubr.f32.mxu0 0.0
    %327 = vmatmul.mubr.f32.gmra.mxu0 %v260
    %v328 = vpop.f32.mrf.mxu0
    %v329 = vadd.f32 %v257, %v328
    %v330 = vpop.f32.mrf.mxu0
    %331 = vdwg.mxu0
    %v332 = vadd.f32 %v251, %v329
    %v333 = vmax.f32 %v332, 0.0
    %v334 = vld [vmem:[%s5] sm:$0xff]
    %v335 = vld [vmem:[%s5 + $0x8] sm:$0xff]
    %v336 = vld [vmem:[%s5 + $0x10] sm:$0xff]
    %v337 = vld [vmem:[%s5 + $0x18] sm:$0xff]
    %v338 = vld [vmem:[%s5 + $0x20] sm:$0xff]
    %v339 = vld [vmem:[%s5 + $0x28] sm:$0xff]
    %v340 = vld [vmem:[%s5 + $0x30] sm:$0xff]
    %v341 = vld [vmem:[%s5 + $0x38] sm:$0xff]
    %v342 = vlaneseq
    %v343 = vshrl.u32 %v342, 7
    %v344 = vsub.s32 0, %v343
    %v345 = vrot.slane %v34, %v344
    %v347 = vsel %vm227, %v333, 0
    %349 = vmatprep.subr.mxu0 0.0
    %350 = vmatpush1.msra.mxu0 0.0
    %351 = vmatprep.subr.mxu0 0.0
    %352 = vmatpush1.msra.mxu0 0.0
    %353 = vmatprep.subr.mxu0 0.0
    %354 = vmatpush1.msra.mxu0 0.0
    %355 = vmatprep.subr.mxu0 0.0
    %356 = vmatpush1.msra.mxu0 0.0
    %357 = vmatprep.subr.mxu0 0.0
    %358 = vmatpush1.msra.mxu0 0.0
    %359 = vmatprep.subr.mxu0 0.0
    %360 = vmatpush1.msra.mxu0 0.0
    %361 = vmatprep.subr.mxu0 0.0
    %362 = vmatpush1.msra.mxu0 0.0
    %363 = vmatprep.subr.mxu0 0.0
    %364 = vmatpush1.msra.mxu0 0.0
    %365 = vmatprep.subr.mxu0 0.0
    %366 = vmatpush1.msra.mxu0 %v341
    %367 = vmatprep.subr.mxu0 0.0
    %368 = vmatpush1.msra.mxu0 %v340
    %369 = vmatprep.subr.mxu0 0.0
    %370 = vmatpush1.msra.mxu0 %v339
    %371 = vmatprep.subr.mxu0 0.0
    %372 = vmatpush1.msra.mxu0 %v338
    %373 = vmatprep.subr.mxu0 0.0
    %374 = vmatpush1.msra.mxu0 %v337
    %375 = vmatprep.subr.mxu0 0.0
    %376 = vmatpush1.msra.mxu0 %v336
    %377 = vmatprep.subr.mxu0 0.0
    %378 = vmatpush1.msra.mxu0 %v335
    %379 = vmatprep.subr.mxu0 0.0
    %380 = vmatpush1.msra.mxu0 %v334
    %381 = vmatprep.subr.mxu0 0.0
    %382 = vmatpush2.msra.mxu0 0.0
    %383 = vmatprep.subr.mxu0 0.0
    %384 = vmatpush2.msra.mxu0 0.0
    %385 = vmatprep.subr.mxu0 0.0
    %386 = vmatpush2.msra.mxu0 0.0
    %387 = vmatprep.subr.mxu0 0.0
    %388 = vmatpush2.msra.mxu0 0.0
    %389 = vmatprep.subr.mxu0 0.0
    %390 = vmatpush2.msra.mxu0 0.0
    %391 = vmatprep.subr.mxu0 0.0
    %392 = vmatpush2.msra.mxu0 0.0
    %393 = vmatprep.subr.mxu0 0.0
    %394 = vmatpush2.msra.mxu0 0.0
    %395 = vmatprep.subr.mxu0 0.0
    %396 = vmatpush2.msra.mxu0 0.0
    %397 = vmatprep.subr.mxu0 0.0
    %398 = vmatpush2.msra.mxu0 0.0
    %399 = vmatprep.subr.mxu0 0.0
    %400 = vmatpush2.msra.mxu0 0.0
    %401 = vmatprep.subr.mxu0 0.0
    %402 = vmatpush2.msra.mxu0 0.0
    %403 = vmatprep.subr.mxu0 0.0
    %404 = vmatpush2.msra.mxu0 0.0
    %405 = vmatprep.subr.mxu0 0.0
    %406 = vmatpush2.msra.mxu0 0.0
    %407 = vmatprep.subr.mxu0 0.0
    %408 = vmatpush2.msra.mxu0 0.0
    %409 = vmatprep.subr.mxu0 0.0
    %410 = vmatpush2.msra.mxu0 0.0
    %411 = vmatprep.subr.mxu0 0.0
    %412 = vmatpush2.msra.mxu0 0.0
    %413 = vmatprep.mubr.f32.mxu0 0.0
    %414 = vmatmul.mubr.f32.gmra.mxu0 %v347
    %v415 = vpop.f32.mrf.mxu0
    %v416 = vadd.f32 %v345, %v415
    %v417 = vpop.f32.mrf.mxu0
    %418 = vdwg.mxu0
    %v419 = vsel %vm120, %v416, 0.0
    %420 = vadd.xlane.f32.xlu0 %v419
    %v421 = vpop.xlane.xlu0 %420
    %v422 = vmul.f32 %v421, %v124
    %v423 = vsub.f32 %v416, %v422
    %v424 = vmul.f32 %v423, %v423
    %v425 = vsel %vm120, %v424, 0.0
    %426 = vadd.xlane.f32.xlu0 %v425
    %v427 = vpop.xlane.xlu0 %426
    %v428 = vmul.f32 %v427, %v124
    %v429 = vadd.f32 %v428, 1e-05
    %v430 = vrsqrt.pop %v429
    %v431 = vmul.f32 %v423, %v430
    %v432 = vlaneseq
    %v433 = vshrl.u32 %v432, 7
    %v434 = vsub.s32 0, %v433
    %v435 = vrot.slane %v35, %v434
    %v436 = vmul.f32 %v431, %v435
    %v437 = vlaneseq
    %v438 = vshrl.u32 %v437, 7
    %v439 = vsub.s32 0, %v438
    %v440 = vrot.slane %v36, %v439
    %v441 = vadd.f32 %v436, %v440
    %v442 = vmax.f32 %v441, 0.0
    %444 = vset.pattern.permute.xlu0 0
    %445 = vperm.xlu0 %444, %v38
    %v446 = vpop.permute.xlu0 %445
    %v449 = vsel %vm120, %v37, 0
    %v452 = vsel %vm120, %v442, 0
    %454 = vmatprep.subr.mxu0 0.0
    %455 = vmatpush1.xpose.msra.mxu0 0.0
    %456 = vmatprep.subr.mxu0 0.0
    %457 = vmatpush1.xpose.msra.mxu0 0.0
    %458 = vmatprep.subr.mxu0 0.0
    %459 = vmatpush1.xpose.msra.mxu0 0.0
    %460 = vmatprep.subr.mxu0 0.0
    %461 = vmatpush1.xpose.msra.mxu0 0.0
    %462 = vmatprep.subr.mxu0 0.0
    %463 = vmatpush1.xpose.msra.mxu0 0.0
    %464 = vmatprep.subr.mxu0 0.0
    %465 = vmatpush1.xpose.msra.mxu0 0.0
    %466 = vmatprep.subr.mxu0 0.0
    %467 = vmatpush1.xpose.msra.mxu0 0.0
    %468 = vmatprep.subr.mxu0 0.0
    %469 = vmatpush1.xpose.msra.mxu0 0.0
    %470 = vmatprep.subr.mxu0 0.0
    %471 = vmatpush1.xpose.msra.mxu0 0.0
    %472 = vmatprep.subr.mxu0 0.0
    %473 = vmatpush1.xpose.msra.mxu0 0.0
    %474 = vmatprep.subr.mxu0 0.0
    %475 = vmatpush1.xpose.msra.mxu0 0.0
    %476 = vmatprep.subr.mxu0 0.0
    %477 = vmatpush1.xpose.msra.mxu0 0.0
    %478 = vmatprep.subr.mxu0 0.0
    %479 = vmatpush1.xpose.msra.mxu0 0.0
    %480 = vmatprep.subr.mxu0 0.0
    %481 = vmatpush1.xpose.msra.mxu0 0.0
    %482 = vmatprep.subr.mxu0 0.0
    %483 = vmatpush1.xpose.msra.mxu0 0.0
    %484 = vmatprep.subr.mxu0 0.0
    %485 = vmatpush1.xpose.msra.mxu0 %v452
    %486 = vmatprep.subr.mxu0 0.0
    %487 = vmatpush2.xpose.msra.mxu0 0.0
    %488 = vmatprep.subr.mxu0 0.0
    %489 = vmatpush2.xpose.msra.mxu0 0.0
    %490 = vmatprep.subr.mxu0 0.0
    %491 = vmatpush2.xpose.msra.mxu0 0.0
    %492 = vmatprep.subr.mxu0 0.0
    %493 = vmatpush2.xpose.msra.mxu0 0.0
    %494 = vmatprep.subr.mxu0 0.0
    %495 = vmatpush2.xpose.msra.mxu0 0.0
    %496 = vmatprep.subr.mxu0 0.0
    %497 = vmatpush2.xpose.msra.mxu0 0.0
    %498 = vmatprep.subr.mxu0 0.0
    %499 = vmatpush2.xpose.msra.mxu0 0.0
    %500 = vmatprep.subr.mxu0 0.0
    %501 = vmatpush2.xpose.msra.mxu0 0.0
    %502 = vmatprep.subr.mxu0 0.0
    %503 = vmatpush2.xpose.msra.mxu0 0.0
    %504 = vmatprep.subr.mxu0 0.0
    %505 = vmatpush2.xpose.msra.mxu0 0.0
    %506 = vmatprep.subr.mxu0 0.0
    %507 = vmatpush2.xpose.msra.mxu0 0.0
    %508 = vmatprep.subr.mxu0 0.0
    %509 = vmatpush2.xpose.msra.mxu0 0.0
    %510 = vmatprep.subr.mxu0 0.0
    %511 = vmatpush2.xpose.msra.mxu0 0.0
    %512 = vmatprep.subr.mxu0 0.0
    %513 = vmatpush2.xpose.msra.mxu0 0.0
    %514 = vmatprep.subr.mxu0 0.0
    %515 = vmatpush2.xpose.msra.mxu0 0.0
    %516 = vmatprep.subr.mxu0 0.0
    %517 = vmatpush2.xpose.msra.mxu0 0.0
    %518 = vmatprep.mubr.f32.mxu0 0.0
    %519 = vmatmul.mubr.f32.gmra.mxu0 %v449
    %v520 = vpop.f32.mrf.mxu0
    %v521 = vadd.f32 %v446, %v520
    %v522 = vpop.f32.mrf.mxu0
    %523 = vdwg.mxu0
    %vm524 = vcmask 57344
    %525 = vst.msk [vmem:[#allocation2] sm:$0x1] %vm524, %v521
    // Predicated region
    $region30: #{critic_forward.1} parent=1 // pred_check
      _
    $region31: #{critic_forward.1} parent=1 // pred_check_branch
      %527 = sbr.rel (0) target = $region33
    $region32: #{critic_forward.1} parent=1 // pred_region
      %s529 = ssub.s32 16, 16
      %530 = vsyncadd [#allocation3], %s529
      %s532 = sshll.u32 [#allocation2], 4
      %s533 = int_to_ptr.vmem [resolvable:$true] %s532
      %535 = dma.vmem_to_hbm [thread:$0]  %s533, 16, %s7, [#allocation3]
    $region33: #{critic_forward.1} parent=1 // pred_fallthru
      _
    // Predicated region
    $region34: #{critic_forward.1} parent=1 // pred_check
      _
    $region35: #{critic_forward.1} parent=1 // pred_check_branch
      %537 = sbr.rel (0) target = $region37
    $region36: #{critic_forward.1} parent=1 // pred_region
      %538 = dma.done [#allocation3], 16
    $region37: #{critic_forward.1} parent=1 // pred_fallthru
      _
    %539 = vsyncpa [#allocation3], 1

</llo_original>
